<compile_context>
chip_gen: v5e
topology: v5e:2x2
jax: 0.10.0
libtpu: 0.0.40
codegen_flags: <defaults>
</compile_context>

<pallas_src>
import jax
import jax.numpy as jnp
from jax.experimental import pallas as pl
from jax.experimental.pallas import tpu as pltpu


# ----------------------------------------------------------------------------
# Pallas identity copy (only used when a device kernel is explicitly requested)
# ----------------------------------------------------------------------------

_MAX_TILE_BYTES = 4 * 1024 * 1024  # keep 2 bufs x (in + out) well under VMEM
_MAX_LANES = 8192                  # cap lane width of the flattened view


def _copy_kernel(x_ref, o_ref):
    # Pure elementwise identity copy of the current VMEM tile.
    o_ref[...] = x_ref[...]


def _lane_dense_2d_shape(total, fallback_cols):
    """Pick (rows, cols) with cols a large multiple of 128 when possible."""
    if total % 128 == 0:
        cols = 128
        k = 128
        while k * 2 <= _MAX_LANES and total % (k * 2) == 0:
            k *= 2
        cols = k
        return total // cols, cols
    # Fallback: keep the original minor dim (still correct, just less dense).
    return total // fallback_cols, fallback_cols


def _pallas_identity_copy(x):
    """Identity copy of `x` through a tiled, pipelined Pallas kernel."""
    total = x.size
    itemsize = jnp.dtype(x.dtype).itemsize
    rows, cols = _lane_dense_2d_shape(total, x.shape[-1])

    # Row tiling: biggest tile that stays <= _MAX_TILE_BYTES, multiple of 8
    # (sublane aligned) unless it spans the whole row extent.
    if rows * cols * itemsize <= _MAX_TILE_BYTES or rows <= 8:
        block_rows = rows
    else:
        block_rows = max(8, min(1024, _MAX_TILE_BYTES // (cols * itemsize)) // 8 * 8)

    x2d = x.reshape(rows, cols)  # contiguous row-major -> free metadata reshape
    grid = (pl.cdiv(rows, block_rows),)

    y2d = pl.pallas_call(
        _copy_kernel,
        out_shape=jax.ShapeDtypeStruct((rows, cols), x2d.dtype),
        grid=grid,
        in_specs=[pl.BlockSpec((block_rows, cols), lambda i: (i, 0))],
        out_specs=pl.BlockSpec((block_rows, cols), lambda i: (i, 0)),
        # Reuse the input buffer for the output (in-place when input is dead).
        input_output_aliases={0: 0},
        compiler_params=pltpu.CompilerParams(
            dimension_semantics=("parallel",),  # shard rows across TCs (v7x)
        ),
        cost_estimate=pl.CostEstimate(
            flops=0,
            transcendentals=0,
            bytes_accessed=int(2 * total * itemsize),
        ),
    )(x2d)
    return y2d


# ----------------------------------------------------------------------------
# UnSqueeze forward
# ----------------------------------------------------------------------------

def unsqueeze_forward(x, *, use_pallas_copy=False):
    """Pallas/JAX equivalent of UnSqueeze.forward.

    - 4-D input (NCHW): null-op, returned unchanged (no kernel, no HBM traffic).
    - 3-D input (N, H, W): returns (N, 1, H, W).

    The unsqueeze is a zero-cost metadata reshape; by default no device copy
    is performed.  Set `use_pallas_copy=True` to route the 3-D path through an
    optimized tiled Pallas identity-copy kernel (e.g. to keep a Pallas op in
    the graph).
    """
    if x.ndim == 4:
        # Null-op: returning the input is free; a copy would waste a full HBM
        # read + write for no semantic change.
        return x
    if x.ndim != 3:
        raise ValueError(f"UnSqueeze expects 3-D or 4-D input, got {x.ndim}-D")

    out_shape = (x.shape[0], 1, x.shape[1], x.shape[2])
    if not use_pallas_copy:
        # Pure metadata reshape -> zero bytes moved.
        return x.reshape(out_shape)

    y = _pallas_identity_copy(x)
    return y.reshape(out_shape)


if __name__ == "__main__":
    key = jax.random.PRNGKey(0)
    k3, k4 = jax.random.split(key)

    # 3-D case: (N, H, W) -> (N, 1, H, W)  -- default (free) path.
    x3 = jax.random.normal(k3, (2, 16, 16), dtype=jnp.float32)
    ref3 = jnp.expand_dims(x3, 1)

    y3 = jax.block_until_ready(unsqueeze_forward(x3))
    assert y3.shape == (2, 1, 16, 16), y3.shape
    assert jnp.array_equal(y3, ref3), "3-D unsqueeze (reshape path) mismatch"

    # 3-D case routed through the tiled Pallas identity-copy kernel.
    y3k = jax.block_until_ready(unsqueeze_forward(x3, use_pallas_copy=True))
    assert y3k.shape == (2, 1, 16, 16), y3k.shape
    assert jnp.array_equal(y3k, ref3), "3-D unsqueeze (Pallas path) mismatch"

    # 4-D case: null-op, input returned unchanged (no kernel launched).
    x4 = jax.random.normal(k4, (2, 4, 16, 16), dtype=jnp.float32)
    y4 = jax.block_until_ready(unsqueeze_forward(x4))
    assert y4.shape == (2, 4, 16, 16), y4.shape
    assert jnp.array_equal(y4, x4), "4-D null-op mismatch"

    print("KERNEL_OK")
</pallas_src>

<mosaic_0001>
module attributes {stable_mosaic.version = 11 : i64} {
  func.func @_copy_kernel(%arg0: i32, %arg1: memref<1x512xf32, #tpu.memory_space<vmem>>, %arg2: memref<1x512xf32, #tpu.memory_space<vmem>>) attributes {dimension_semantics = [#tpu.dimension_semantics<parallel>], iteration_bounds = array<i64: 1>, scalar_prefetch = 0 : i64, scratch_operands = 0 : i64, tpu.core_type = #tpu.core_type<tc>, window_params = [{transform_indices = @transform_0, window_bounds = array<i64: 1, 512>}, {transform_indices = @transform_1, window_bounds = array<i64: 1, 512>}]} {
    %c0 = arith.constant 0 : index
    %c0_0 = arith.constant 0 : index
    %0 = vector.load %arg1[%c0, %c0_0] : memref<1x512xf32, #tpu.memory_space<vmem>>, vector<1x512xf32>
    %c0_1 = arith.constant 0 : index
    %c0_2 = arith.constant 0 : index
    %1 = vector.load %arg2[%c0_1, %c0_2] : memref<1x512xf32, #tpu.memory_space<vmem>>, vector<1x512xf32>
    tpu.vector_store %arg2[%c0_1, %c0_2], %0 {strides = array<i32>} : memref<1x512xf32, #tpu.memory_space<vmem>>, vector<1x512xf32>,
    return
  }
  func.func @transform_0(%arg0: i32) -> (i32, i32) {
    %c0_i32 = arith.constant 0 : i32
    %c0_i32_0 = arith.constant 0 : i32
    return %arg0, %c0_i32 : i32, i32
  }
  func.func @transform_1(%arg0: i32) -> (i32, i32) {
    %c0_i32 = arith.constant 0 : i32
    %c0_i32_0 = arith.constant 0 : i32
    return %arg0, %c0_i32 : i32, i32
  }
}

</mosaic_0001>

<llo_original>
// kernel: tpu_custom_call.1
$region0: #{tpu_custom_call.1}
  #allocation0 [shape = 'u32[]', space=smem, size = 0x4, offset = 0x4, fixed_abs, tag = 'smem constant byte address 0x4 - core index']
  #allocation1 [shape = 'u32[72,128]{1,0:T(1,128)}', space=vmem, size = 0x9000, scoped, tag = 'internal scratch']
  %s0 = inlined_call_operand.hbm [shape: f32[1,512], index: 0, kind: input, shape index: {}, may-alias: {0,1}]
  %s1 = inlined_call_operand.hbm [shape: f32[1,512], index: 1, kind: output, shape index: {}, may-alias: {0,1}]
  %s2 = sld [smem:[#allocation0]]
  $region18: #{tpu_custom_call.1} parent=0
    _
  %s4 = ssub.s32 1, %s2
  %s5 = scalar_select 0, %s4, %s2
  $region1: #{tpu_custom_call.1} parent=0
    #allocation2 [shape = 'u8[2048]{0}', space=vmem, size = 0x800, scoped, tag = 'input window, operand 0, single buffered']
    #allocation3 [shape = 's32[1]{0}', space=sflag, size = 0x4, scoped, tag = 'scoped memory for tpu_custom_call.1']
    #allocation4 [shape = 's32[1]{0}', space=sflag, size = 0x4, scoped, tag = 'scoped memory for tpu_custom_call.1']
    #allocation5 [shape = 'u8[2048]{0}', space=vmem, size = 0x800, scoped, tag = 'output window, operand 0, single buffered']
    %6 = vsyncpa [#allocation3], 0
    %7 = vsyncpa [#allocation4], 0
    // Predicated region
    $region2: #{tpu_custom_call.1} parent=1 // pred_check
      _
    $region3: #{tpu_custom_call.1} parent=1 // pred_check_branch
      %9 = sbr.rel (0) target = $region5
    $region4: #{tpu_custom_call.1} parent=1 // pred_region
      %11 = vsyncadd [#allocation3], 0
      %s13 = sshll.u32 %s0, 4
      %s14 = int_to_ptr.hbm [resolvable:$true] %s13
      %s15 = sshll.u32 [#allocation2], 4
      %s16 = int_to_ptr.vmem [resolvable:$true] %s15
      %18 = dma.hbm_to_vmem [thread:$0]  %s14, 64, %s16, [#allocation3]
    $region5: #{tpu_custom_call.1} parent=1 // pred_fallthru
      _
    // Predicated region
    $region6: #{tpu_custom_call.1} parent=1 // pred_check
      _
    $region7: #{tpu_custom_call.1} parent=1 // pred_check_branch
      %20 = sbr.rel (0) target = $region9
    $region8: #{tpu_custom_call.1} parent=1 // pred_region
      %22 = dma.done [#allocation3], 64
    $region9: #{tpu_custom_call.1} parent=1 // pred_fallthru
      _
    %v23 = vld [vmem:[#allocation2] sm:$0xf]
    %v24 = vlaneseq
    %vm25 = vcmp.ge.s32.totalorder %v24, 0
    %vm26 = vcmp.lt.s32.totalorder %v24, 512
    %vm27 = vmand %vm25, %vm26
    %28 = vst.msk [vmem:[#allocation5] sm:$0xf] %vm27, %v23
    // Predicated region
    $region10: #{tpu_custom_call.1} parent=1 // pred_check
      _
    $region11: #{tpu_custom_call.1} parent=1 // pred_check_branch
      %30 = sbr.rel (0) target = $region13
    $region12: #{tpu_custom_call.1} parent=1 // pred_region
      %32 = vsyncadd [#allocation4], 0
      %s34 = sshll.u32 [#allocation5], 4
      %s35 = int_to_ptr.vmem [resolvable:$true] %s34
      %s36 = sshll.u32 %s1, 4
      %s37 = int_to_ptr.hbm [resolvable:$true] %s36
      %39 = dma.vmem_to_hbm [thread:$0]  %s35, 64, %s37, [#allocation4]
    $region13: #{tpu_custom_call.1} parent=1 // pred_fallthru
      _
    // Predicated region
    $region14: #{tpu_custom_call.1} parent=1 // pred_check
      _
    $region15: #{tpu_custom_call.1} parent=1 // pred_check_branch
      %41 = sbr.rel (0) target = $region17
    $region16: #{tpu_custom_call.1} parent=1 // pred_region
      %43 = dma.done [#allocation4], 64
    $region17: #{tpu_custom_call.1} parent=1 // pred_fallthru
      _
    %44 = vsyncpa [#allocation3], 1
    %45 = vsyncpa [#allocation4], 1

</llo_original>
